<compile_context>
chip_gen: v5e
topology: v5e:2x2
jax: 0.10.0
libtpu: 0.0.40
codegen_flags: <defaults>
</compile_context>

<pallas_src>
import jax
import jax.numpy as jnp
from jax import lax
from jax.experimental import pallas as pl
from jax.experimental.pallas import tpu as pltpu


def _largest_divisor_at_most(n, cap):
    cap = max(1, min(n, cap))
    for d in range(cap, 0, -1):
        if n % d == 0:
            return d
    return 1


def _pick_tiles(n_batch, h_out, w_out):
    """Choose (batch-block, row-tile) so per-step VMEM stays bounded, the matmul
    M dim is MXU-friendly, and (when possible) the grid keeps >= 2 parallel steps."""
    # Bound output pixels per tile (per batch item) to ~1024 -> per-step blocks
    # stay well under v5e's 16 MiB scoped default and v7x's 64 MiB physical VMEM.
    max_rows = max(1, 1024 // max(1, w_out))
    h_tile = _largest_divisor_at_most(h_out, max_rows)
    n_h = h_out // h_tile
    # Fold batch items when the per-item matmul is tiny, but keep at least two
    # grid steps when the problem has them (v7x megacore = 2 TCs to feed).
    nb = 1
    m_item = h_tile * w_out
    while (nb * 2 <= n_batch and n_batch % (nb * 2) == 0
           and nb * m_item < 128
           and (n_batch // (nb * 2)) * n_h >= 2):
        nb *= 2
    return nb, h_tile, n_h


def _make_conv_kernel(nb, h_tile, w_out, c_in, c_out):
    """3x3 / stride-2 conv tile: pack 9 taps into a (m, 9*C_in) slab -> 1 matmul."""
    m = nb * h_tile * w_out

    def kernel(x00_ref, x01_ref, x10_ref, x11_ref, w_ref, b_ref, o_ref, slab_ref):
        # parity[row_parity][col_parity] -> matching space-to-depth plane ref.
        # Each plane block: (nb, h_tile + 1, w_out + 1, c_in), bf16.
        parity = ((x00_ref, x01_ref), (x10_ref, x11_ref))
        for kh in range(3):
            ph, dh = kh % 2, kh // 2
            for kw in range(3):
                pw, dw = kw % 2, kw // 2
                xr = parity[ph][pw]
                # Contiguous static sub-block: (nb, h_tile, w_out, c_in).
                tap = xr[:, dh:dh + h_tile, dw:dw + w_out, :]
                t = kh * 3 + kw
                slab_ref[:, t * c_in:(t + 1) * c_in] = tap.reshape(m, c_in)
        # One fused MXU contraction over K = 9*C_in (instead of nine K=C_in dots
        # plus eight full-size f32 accumulate passes and a zero-init).
        acc = jnp.dot(slab_ref[...], w_ref[...],
                      preferred_element_type=jnp.float32)
        out = acc + b_ref[...]                                   # f32 bias add
        o_ref[...] = out.reshape(nb, h_tile, w_out, c_out).astype(o_ref.dtype)

    return kernel


def down_sample(x_nchw, weight, bias):
    """Forward pass of downSample: Conv2d(C, C, 3, stride=2, padding=1).

    x_nchw : (N, C, H, W)        float32 (PyTorch layout)
    weight : (C_out, C_in, 3, 3) float32 (PyTorch layout)
    bias   : (C_out,)            float32
    returns: (N, C_out, H_out, W_out) float32
    """
    N, C, H, W = x_nchw.shape
    C_out = weight.shape[0]
    H_out = (H - 1) // 2 + 1
    W_out = (W - 1) // 2 + 1

    nb, h_tile, n_h = _pick_tiles(N, H_out, W_out)
    m_tile = nb * h_tile * W_out

    # ---- glue (fused XLA copies): NCHW -> padded NHWC -> 2x2 parity split ----
    Hp = 2 * (H_out + 1)
    Wp = 2 * (W_out + 1)
    x = jnp.transpose(x_nchw, (0, 2, 3, 1))                               # NHWC
    x = jnp.pad(x, ((0, 0), (1, Hp - H - 1), (1, Wp - W - 1), (0, 0)))    # pad=1 (+align)
    x = x.reshape(N, H_out + 1, 2, W_out + 1, 2, C).astype(jnp.bfloat16)
    planes = [x[:, :, ph, :, pw, :] for ph in (0, 1) for pw in (0, 1)]
    # Row-chunk each parity plane with a 1-row halo so the H_out grid axis can
    # use a plain BlockSpec (overlapping windows pre-materialized; overhead is
    # one duplicated row per chunk).  Chunks are folded back into the H axis so
    # the kernel refs stay rank-4.
    planes = [
        jnp.stack([p[:, t * h_tile:t * h_tile + h_tile + 1] for t in range(n_h)],
                  axis=1).reshape(N, n_h * (h_tile + 1), W_out + 1, C)
        for p in planes
    ]

    # PyTorch (C_out, C_in, kh, kw) -> fused (9*C_in, C_out) bf16 matrix whose
    # row order matches the slab column order (kh, kw, c_in).  No lane padding:
    # MXU cost is identical and the output writeback stays at its true size.
    w = jnp.transpose(weight, (2, 3, 1, 0)).reshape(9 * C, C_out).astype(jnp.bfloat16)
    b = bias.astype(jnp.float32).reshape(1, C_out)

    kernel = _make_conv_kernel(nb, h_tile, W_out, C, C_out)

    x_spec = pl.BlockSpec((nb, h_tile + 1, W_out + 1, C),
                          lambda ni, ti: (ni, ti, 0, 0))
    # TODO(synk): weight/bias could use pipeline_mode=pl.Buffered(1) (constant
    # index maps) to skip double-buffering them when VMEM is tight.
    w_spec = pl.BlockSpec((9 * C, C_out), lambda ni, ti: (0, 0))
    b_spec = pl.BlockSpec((1, C_out), lambda ni, ti: (0, 0))
    o_spec = pl.BlockSpec((nb, h_tile, W_out, C_out),
                          lambda ni, ti: (ni, ti, 0, 0))

    grid = (N // nb, n_h)
    grid_spec = pltpu.PrefetchScalarGridSpec(
        num_scalar_prefetch=0,
        grid=grid,
        in_specs=[x_spec, x_spec, x_spec, x_spec, w_spec, b_spec],
        out_specs=o_spec,
        scratch_shapes=[pltpu.VMEM((m_tile, 9 * C), jnp.bfloat16)],
    )

    # Rough per-step VMEM need (x2 for double buffering, lane-padded) -> scoped
    # VMEM limit, clamped to a value that is valid on all generations.
    plane_block = nb * (h_tile + 1) * (W_out + 1) * max(C, 128) * 2
    out_block = nb * h_tile * W_out * max(C_out, 128) * 4
    need = (2 * (4 * plane_block + out_block)
            + 2 * 9 * C * max(C_out, 128) * 2
            + m_tile * max(9 * C, 128) * 2)
    vmem_limit = int(min(48 * 2 ** 20, max(32 * 2 ** 20, 2 * need)))

    flops = 2 * N * H_out * W_out * 9 * C * C_out
    bytes_accessed = (4 * N * n_h * (h_tile + 1) * (W_out + 1) * C * 2  # bf16 planes
                      + 9 * C * C_out * 2                               # bf16 weights
                      + C_out * 4                                       # f32 bias
                      + N * H_out * W_out * C_out * 4)                  # f32 output

    out = pl.pallas_call(
        kernel,
        out_shape=jax.ShapeDtypeStruct((N, H_out, W_out, C_out), jnp.float32),
        grid_spec=grid_spec,
        compiler_params=pltpu.CompilerParams(
            dimension_semantics=("parallel", "parallel"),
            vmem_limit_bytes=vmem_limit),
        cost_estimate=pl.CostEstimate(flops=flops, transcendentals=0,
                                      bytes_accessed=bytes_accessed),
    )(*planes, w, b)

    # TODO(synk): for very small C (< ~32) the parity planes are lane-sparse;
    # packing (W_out+1)*C into the minor dim + pltpu.roll for the kw shift would
    # shrink the VMEM/DMA footprint further (review item 5, not applied here for
    # lowering robustness).
    return jnp.transpose(out, (0, 3, 1, 2))                              # NCHW


if __name__ == "__main__":
    key = jax.random.PRNGKey(0)
    k_x, k_w, k_b = jax.random.split(key, 3)

    N, C, H, W = 2, 4, 16, 16
    x = jax.random.normal(k_x, (N, C, H, W), dtype=jnp.float32)
    # Deterministic synthetic parameters (module __init__: Conv2d(C, C, 3, 3)).
    weight = 0.1 * jax.random.normal(k_w, (C, C, 3, 3), dtype=jnp.float32)
    bias = 0.1 * jax.random.normal(k_b, (C,), dtype=jnp.float32)

    down_fn = jax.jit(down_sample)
    y = jax.block_until_ready(down_fn(x, weight, bias))

    # Sanity check against XLA's native convolution (same semantics as PyTorch
    # Conv2d).  Operands are bf16-quantized inside the kernel -> looser atol.
    y_ref = lax.conv_general_dilated(
        x, weight, window_strides=(2, 2), padding=((1, 1), (1, 1)),
        dimension_numbers=("NCHW", "OIHW", "NCHW"),
    ) + bias.reshape(1, C, 1, 1)
    assert y.shape == (N, C, H // 2, W // 2), y.shape
    assert jnp.allclose(y, y_ref, atol=3e-2, rtol=3e-2), float(jnp.max(jnp.abs(y - y_ref)))

    print("KERNEL_OK")
</pallas_src>

<mosaic_0001>
module attributes {stable_mosaic.version = 11 : i64} {
  func.func @kernel(%arg0: i32, %arg1: i32, %arg2: memref<1x9x9x4xbf16, #tpu.memory_space<vmem>>, %arg3: memref<1x9x9x4xbf16, #tpu.memory_space<vmem>>, %arg4: memref<1x9x9x4xbf16, #tpu.memory_space<vmem>>, %arg5: memref<1x9x9x4xbf16, #tpu.memory_space<vmem>>, %arg6: memref<36x4xbf16, #tpu.memory_space<vmem>>, %arg7: memref<1x4xf32, #tpu.memory_space<vmem>>, %arg8: memref<1x8x8x4xf32, #tpu.memory_space<vmem>>, %arg9: memref<64x36xbf16, #tpu.memory_space<vmem>>) attributes {dimension_semantics = [#tpu.dimension_semantics<parallel>, #tpu.dimension_semantics<parallel>], iteration_bounds = array<i64: 2, 1>, scalar_prefetch = 0 : i64, scratch_operands = 1 : i64, tpu.core_type = #tpu.core_type<tc>, window_params = [{transform_indices = @transform_0, window_bounds = array<i64: 1, 9, 9, 4>}, {transform_indices = @transform_1, window_bounds = array<i64: 1, 9, 9, 4>}, {transform_indices = @transform_2, window_bounds = array<i64: 1, 9, 9, 4>}, {transform_indices = @transform_3, window_bounds = array<i64: 1, 9, 9, 4>}, {pipeline_mode = #tpu.pipeline_mode<synchronous>, transform_indices = @transform_4, window_bounds = array<i64: 36, 4>}, {pipeline_mode = #tpu.pipeline_mode<synchronous>, transform_indices = @transform_5, window_bounds = array<i64: 1, 4>}, {transform_indices = @transform_6, window_bounds = array<i64: 1, 8, 8, 4>}]} {
    %c0 = arith.constant 0 : index
    %c0_0 = arith.constant 0 : index
    %c0_1 = arith.constant 0 : index
    %c0_2 = arith.constant 0 : index
    %0 = vector.load %arg2[%c0, %c0_0, %c0_1, %c0_2] : memref<1x9x9x4xbf16, #tpu.memory_space<vmem>>, vector<1x8x8x4xbf16>
    %1 = vector.shape_cast %0 : vector<1x8x8x4xbf16> to vector<64x4xbf16>
    %c0_3 = arith.constant 0 : index
    %c0_4 = arith.constant 0 : index
    %2 = vector.load %arg9[%c0_3, %c0_4] : memref<64x36xbf16, #tpu.memory_space<vmem>>, vector<64x4xbf16>
    tpu.vector_store %arg9[%c0_3, %c0_4], %1 {strides = array<i32>} : memref<64x36xbf16, #tpu.memory_space<vmem>>, vector<64x4xbf16>,
    %c0_5 = arith.constant 0 : index
    %c0_6 = arith.constant 0 : index
    %c0_7 = arith.constant 0 : index
    %c0_8 = arith.constant 0 : index
    %3 = vector.load %arg3[%c0_5, %c0_6, %c0_7, %c0_8] : memref<1x9x9x4xbf16, #tpu.memory_space<vmem>>, vector<1x8x8x4xbf16>
    %4 = vector.shape_cast %3 : vector<1x8x8x4xbf16> to vector<64x4xbf16>
    %c0_9 = arith.constant 0 : index
    %c4 = arith.constant 4 : index
    %5 = vector.load %arg9[%c0_9, %c4] : memref<64x36xbf16, #tpu.memory_space<vmem>>, vector<64x4xbf16>
    tpu.vector_store %arg9[%c0_9, %c4], %4 {strides = array<i32>} : memref<64x36xbf16, #tpu.memory_space<vmem>>, vector<64x4xbf16>,
    %c0_10 = arith.constant 0 : index
    %c0_11 = arith.constant 0 : index
    %c1 = arith.constant 1 : index
    %c0_12 = arith.constant 0 : index
    %6 = vector.load %arg2[%c0_10, %c0_11, %c1, %c0_12] : memref<1x9x9x4xbf16, #tpu.memory_space<vmem>>, vector<1x8x8x4xbf16>
    %7 = vector.shape_cast %6 : vector<1x8x8x4xbf16> to vector<64x4xbf16>
    %c0_13 = arith.constant 0 : index
    %c8 = arith.constant 8 : index
    %8 = vector.load %arg9[%c0_13, %c8] : memref<64x36xbf16, #tpu.memory_space<vmem>>, vector<64x4xbf16>
    tpu.vector_store %arg9[%c0_13, %c8], %7 {strides = array<i32>} : memref<64x36xbf16, #tpu.memory_space<vmem>>, vector<64x4xbf16>,
    %c0_14 = arith.constant 0 : index
    %c0_15 = arith.constant 0 : index
    %c0_16 = arith.constant 0 : index
    %c0_17 = arith.constant 0 : index
    %9 = vector.load %arg4[%c0_14, %c0_15, %c0_16, %c0_17] : memref<1x9x9x4xbf16, #tpu.memory_space<vmem>>, vector<1x8x8x4xbf16>
    %10 = vector.shape_cast %9 : vector<1x8x8x4xbf16> to vector<64x4xbf16>
    %c0_18 = arith.constant 0 : index
    %c12 = arith.constant 12 : index
    %11 = vector.load %arg9[%c0_18, %c12] : memref<64x36xbf16, #tpu.memory_space<vmem>>, vector<64x4xbf16>
    tpu.vector_store %arg9[%c0_18, %c12], %10 {strides = array<i32>} : memref<64x36xbf16, #tpu.memory_space<vmem>>, vector<64x4xbf16>,
    %c0_19 = arith.constant 0 : index
    %c0_20 = arith.constant 0 : index
    %c0_21 = arith.constant 0 : index
    %c0_22 = arith.constant 0 : index
    %12 = vector.load %arg5[%c0_19, %c0_20, %c0_21, %c0_22] : memref<1x9x9x4xbf16, #tpu.memory_space<vmem>>, vector<1x8x8x4xbf16>
    %13 = vector.shape_cast %12 : vector<1x8x8x4xbf16> to vector<64x4xbf16>
    %c0_23 = arith.constant 0 : index
    %c16 = arith.constant 16 : index
    %14 = vector.load %arg9[%c0_23, %c16] : memref<64x36xbf16, #tpu.memory_space<vmem>>, vector<64x4xbf16>
    tpu.vector_store %arg9[%c0_23, %c16], %13 {strides = array<i32>} : memref<64x36xbf16, #tpu.memory_space<vmem>>, vector<64x4xbf16>,
    %c0_24 = arith.constant 0 : index
    %c0_25 = arith.constant 0 : index
    %c1_26 = arith.constant 1 : index
    %c0_27 = arith.constant 0 : index
    %15 = vector.load %arg4[%c0_24, %c0_25, %c1_26, %c0_27] : memref<1x9x9x4xbf16, #tpu.memory_space<vmem>>, vector<1x8x8x4xbf16>
    %16 = vector.shape_cast %15 : vector<1x8x8x4xbf16> to vector<64x4xbf16>
    %c0_28 = arith.constant 0 : index
    %c20 = arith.constant 20 : index
    %17 = vector.load %arg9[%c0_28, %c20] : memref<64x36xbf16, #tpu.memory_space<vmem>>, vector<64x4xbf16>
    tpu.vector_store %arg9[%c0_28, %c20], %16 {strides = array<i32>} : memref<64x36xbf16, #tpu.memory_space<vmem>>, vector<64x4xbf16>,
    %c0_29 = arith.constant 0 : index
    %c1_30 = arith.constant 1 : index
    %c0_31 = arith.constant 0 : index
    %c0_32 = arith.constant 0 : index
    %18 = vector.load %arg2[%c0_29, %c1_30, %c0_31, %c0_32] : memref<1x9x9x4xbf16, #tpu.memory_space<vmem>>, vector<1x8x8x4xbf16>
    %19 = vector.shape_cast %18 : vector<1x8x8x4xbf16> to vector<64x4xbf16>
    %c0_33 = arith.constant 0 : index
    %c24 = arith.constant 24 : index
    %20 = vector.load %arg9[%c0_33, %c24] : memref<64x36xbf16, #tpu.memory_space<vmem>>, vector<64x4xbf16>
    tpu.vector_store %arg9[%c0_33, %c24], %19 {strides = array<i32>} : memref<64x36xbf16, #tpu.memory_space<vmem>>, vector<64x4xbf16>,
    %c0_34 = arith.constant 0 : index
    %c1_35 = arith.constant 1 : index
    %c0_36 = arith.constant 0 : index
    %c0_37 = arith.constant 0 : index
    %21 = vector.load %arg3[%c0_34, %c1_35, %c0_36, %c0_37] : memref<1x9x9x4xbf16, #tpu.memory_space<vmem>>, vector<1x8x8x4xbf16>
    %22 = vector.shape_cast %21 : vector<1x8x8x4xbf16> to vector<64x4xbf16>
    %c0_38 = arith.constant 0 : index
    %c28 = arith.constant 28 : index
    %23 = vector.load %arg9[%c0_38, %c28] : memref<64x36xbf16, #tpu.memory_space<vmem>>, vector<64x4xbf16>
    tpu.vector_store %arg9[%c0_38, %c28], %22 {strides = array<i32>} : memref<64x36xbf16, #tpu.memory_space<vmem>>, vector<64x4xbf16>,
    %c0_39 = arith.constant 0 : index
    %c1_40 = arith.constant 1 : index
    %c1_41 = arith.constant 1 : index
    %c0_42 = arith.constant 0 : index
    %24 = vector.load %arg2[%c0_39, %c1_40, %c1_41, %c0_42] : memref<1x9x9x4xbf16, #tpu.memory_space<vmem>>, vector<1x8x8x4xbf16>
    %25 = vector.shape_cast %24 : vector<1x8x8x4xbf16> to vector<64x4xbf16>
    %c0_43 = arith.constant 0 : index
    %c32 = arith.constant 32 : index
    %26 = vector.load %arg9[%c0_43, %c32] : memref<64x36xbf16, #tpu.memory_space<vmem>>, vector<64x4xbf16>
    tpu.vector_store %arg9[%c0_43, %c32], %25 {strides = array<i32>} : memref<64x36xbf16, #tpu.memory_space<vmem>>, vector<64x4xbf16>,
    %c0_44 = arith.constant 0 : index
    %c0_45 = arith.constant 0 : index
    %27 = vector.load %arg9[%c0_44, %c0_45] : memref<64x36xbf16, #tpu.memory_space<vmem>>, vector<64x36xbf16>
    %c0_46 = arith.constant 0 : index
    %c0_47 = arith.constant 0 : index
    %28 = vector.load %arg6[%c0_46, %c0_47] : memref<36x4xbf16, #tpu.memory_space<vmem>>, vector<36x4xbf16>
    %cst = arith.constant dense<0.000000e+00> : vector<64x4xf32>
    %29 = tpu.matmul %27, %28, %cst {dimension_numbers = #tpu.dot_dimension_numbers<[1], [0], [0], [1], [0, 0, 1, 1], [], []>} : vector<64x36xbf16>, vector<36x4xbf16>, vector<64x4xf32> -> vector<64x4xf32>
    %c0_48 = arith.constant 0 : index
    %c0_49 = arith.constant 0 : index
    %30 = vector.load %arg7[%c0_48, %c0_49] : memref<1x4xf32, #tpu.memory_space<vmem>>, vector<1x4xf32>
    %31 = vector.broadcast %30 : vector<1x4xf32> to vector<64x4xf32>
    %32 = arith.addf %29, %31 : vector<64x4xf32>
    %33 = vector.shape_cast %32 : vector<64x4xf32> to vector<1x8x8x4xf32>
    %c0_50 = arith.constant 0 : index
    %c0_51 = arith.constant 0 : index
    %c0_52 = arith.constant 0 : index
    %c0_53 = arith.constant 0 : index
    %34 = vector.load %arg8[%c0_50, %c0_51, %c0_52, %c0_53] : memref<1x8x8x4xf32, #tpu.memory_space<vmem>>, vector<1x8x8x4xf32>
    tpu.vector_store %arg8[%c0_50, %c0_51, %c0_52, %c0_53], %33 {strides = array<i32>} : memref<1x8x8x4xf32, #tpu.memory_space<vmem>>, vector<1x8x8x4xf32>,
    return
  }
  func.func @transform_0(%arg0: i32, %arg1: i32) -> (i32, i32, i32, i32) {
    %c0_i32 = arith.constant 0 : i32
    %c0_i32_0 = arith.constant 0 : i32
    %c0_i32_1 = arith.constant 0 : i32
    return %arg0, %arg1, %c0_i32, %c0_i32_0 : i32, i32, i32, i32
  }
  func.func @transform_1(%arg0: i32, %arg1: i32) -> (i32, i32, i32, i32) {
    %c0_i32 = arith.constant 0 : i32
    %c0_i32_0 = arith.constant 0 : i32
    %c0_i32_1 = arith.constant 0 : i32
    return %arg0, %arg1, %c0_i32, %c0_i32_0 : i32, i32, i32, i32
  }
  func.func @transform_2(%arg0: i32, %arg1: i32) -> (i32, i32, i32, i32) {
    %c0_i32 = arith.constant 0 : i32
    %c0_i32_0 = arith.constant 0 : i32
    %c0_i32_1 = arith.constant 0 : i32
    return %arg0, %arg1, %c0_i32, %c0_i32_0 : i32, i32, i32, i32
  }
  func.func @transform_3(%arg0: i32, %arg1: i32) -> (i32, i32, i32, i32) {
    %c0_i32 = arith.constant 0 : i32
    %c0_i32_0 = arith.constant 0 : i32
    %c0_i32_1 = arith.constant 0 : i32
    return %arg0, %arg1, %c0_i32, %c0_i32_0 : i32, i32, i32, i32
  }
  func.func @transform_4(%arg0: i32, %arg1: i32) -> (i32, i32) {
    %c0_i32 = arith.constant 0 : i32
    %c0_i32_0 = arith.constant 0 : i32
    %c0_i32_1 = arith.constant 0 : i32
    return %c0_i32, %c0_i32_0 : i32, i32
  }
  func.func @transform_5(%arg0: i32, %arg1: i32) -> (i32, i32) {
    %c0_i32 = arith.constant 0 : i32
    %c0_i32_0 = arith.constant 0 : i32
    %c0_i32_1 = arith.constant 0 : i32
    return %c0_i32, %c0_i32_0 : i32, i32
  }
  func.func @transform_6(%arg0: i32, %arg1: i32) -> (i32, i32, i32, i32) {
    %c0_i32 = arith.constant 0 : i32
    %c0_i32_0 = arith.constant 0 : i32
    %c0_i32_1 = arith.constant 0 : i32
    return %arg0, %arg1, %c0_i32, %c0_i32_0 : i32, i32, i32, i32
  }
}

</mosaic_0001>

<llo_original>
// kernel: down_sample.1
$region0: #{down_sample.1}
  #allocation0 [shape = 'u32[]', space=smem, size = 0x4, offset = 0x4, fixed_abs, tag = 'smem constant byte address 0x4 - core index']
  #allocation1 [shape = 'u32[72,128]{1,0:T(1,128)}', space=vmem, size = 0x9000, scoped, tag = 'internal scratch']
  #allocation2 [shape = 'bf16[64,36]{1,0:T(8,128)(2,1)}', space=vmem, size = 0x4000, scoped, tag = 'scratch operand']
  %s0 = inlined_call_operand.vmem [shape: bf16[2,9,9,4], index: 0, kind: input, shape index: {}]
  %s1 = inlined_call_operand.vmem [shape: bf16[2,9,9,4], index: 1, kind: input, shape index: {}]
  %s2 = inlined_call_operand.vmem [shape: bf16[2,9,9,4], index: 2, kind: input, shape index: {}]
  %s3 = inlined_call_operand.vmem [shape: bf16[2,9,9,4], index: 3, kind: input, shape index: {}]
  %s4 = inlined_call_operand.vmem [shape: bf16[36,4], index: 4, kind: input, shape index: {}]
  %s5 = inlined_call_operand.vmem [shape: f32[1,4], index: 5, kind: input, shape index: {}]
  %s6 = inlined_call_operand.vmem [shape: f32[2,8,8,4], index: 6, kind: output, shape index: {}]
  %s7 = sld [smem:[#allocation0]]
  $region57: #{down_sample.1} parent=0
    _
  %s9 = ssub.s32 1, %s7
  %s10 = scalar_select 0, %s9, %s7
  loop: start=0, step=1, limit=4
  $region2: #{down_sample.1} parent=0 // loop_pre_header
    _
  $region3: #{down_sample.1} parent=0 // loop_header
    %s12 = sphi 0, %s16
    %p13 = scmp.ge.s32.totalorder %s12, 4
    %s19 = sphi 0, %s31
    %s20 = sphi 0, %s27
    %s21 = sphi 0, %s19
    %s22 = sphi 0, %s20
    %s23 = sphi 0, %s21
    %s24 = sphi 0, %s22
    %s36 = sphi 0, %s38
    %s39 = sphi 0, %s36
    %s40 = sphi 0, %s39
    %s56 = sphi 0, %s40
    %s64 = sphi 0, %s66
    %s67 = sphi 0, %s64
    %s68 = sphi 0, %s67
    %s84 = sphi 0, %s68
    %s92 = sphi 0, %s94
    %s95 = sphi 0, %s92
    %s96 = sphi 0, %s95
    %s112 = sphi 0, %s96
    %s120 = sphi 0, %s122
    %s123 = sphi 0, %s120
    %s124 = sphi 0, %s123
    %s140 = sphi 0, %s124
    %s144 = sphi 0, %s144
    %s146 = sphi 0, %s144
    %s147 = sphi 0, %s146
    %s161 = sphi 0, %s147
    %s165 = sphi 0, %s165
    %s167 = sphi 0, %s165
    %s168 = sphi 0, %s167
    %s182 = sphi 0, %s168
    %s190 = sphi 0, %s192
    %s193 = sphi 0, %s190
    %s194 = sphi 0, %s193
    %s210 = sphi 0, %s194
  $region4: #{down_sample.1} parent=0 // loop_header_branch
    %15 = sbr.rel (%p13) target = $region8
  $region5: #{down_sample.1} parent=0 // loop_body
    %s17 = ssub.s32 %s12, 1
    %s18 = ssub.s32 %s12, 2
    %s25 = sadd.s32 1, %s20
    %p26 = scmp.ge.s32.totalorder %s25, 1
    %s27 = scalar_select %p26, 0, %s25
    %s28 = sadd.s32 1, %s19
    %s29 = scalar_select %p26, %s28, %s19
    %p30 = scmp.ge.s32.totalorder %s29, 2
    %s31 = scalar_select %p30, 0, %s29
    %s32 = ssub.s32 %s19, %s31
    %s33 = ssub.s32 %s20, %s27
    %s34 = sor.u32 %s32, %s33
    %p35 = scmp.eq.s32.totalorder %s34, 0
    %s37 = sadd.s32 %s36, 1
    %s38 = scalar_select %p35, %s36, %s37
    %p41 = pneg %p35
    %p42 = scmp.eq.s32.totalorder %s12, 1
    %p43 = por %p41, %p42
    %p44 = scmp.ne.s32.totalorder %s36, %s39
    %p45 = scmp.eq.s32.totalorder %s12, 0
    %p46 = por %p44, %p45
    %p47 = scmp.ne.s32.totalorder %s36, %s39
    %p48 = scmp.eq.s32.totalorder %s17, 1
    %p49 = por %p47, %p48
    %p50 = scmp.ne.s32.totalorder %s39, %s40
    %p51 = scmp.eq.s32.totalorder %s17, 0
    %p52 = por %p50, %p51
    %p53 = scmp.ne.s32.totalorder %s39, %s40
    %p54 = scmp.eq.s32.totalorder %s18, 1
    %p55 = por %p53, %p54
    %p57 = scmp.ne.s32.totalorder %s40, %s56
    %p58 = scmp.eq.s32.totalorder %s18, 0
    %p59 = por %p57, %p58
    %s60 = ssub.s32 %s19, %s31
    %s61 = ssub.s32 %s20, %s27
    %s62 = sor.u32 %s60, %s61
    %p63 = scmp.eq.s32.totalorder %s62, 0
    %s65 = sadd.s32 %s64, 1
    %s66 = scalar_select %p63, %s64, %s65
    %p69 = pneg %p63
    %p70 = scmp.eq.s32.totalorder %s12, 1
    %p71 = por %p69, %p70
    %p72 = scmp.ne.s32.totalorder %s64, %s67
    %p73 = scmp.eq.s32.totalorder %s12, 0
    %p74 = por %p72, %p73
    %p75 = scmp.ne.s32.totalorder %s64, %s67
    %p76 = scmp.eq.s32.totalorder %s17, 1
    %p77 = por %p75, %p76
    %p78 = scmp.ne.s32.totalorder %s67, %s68
    %p79 = scmp.eq.s32.totalorder %s17, 0
    %p80 = por %p78, %p79
    %p81 = scmp.ne.s32.totalorder %s67, %s68
    %p82 = scmp.eq.s32.totalorder %s18, 1
    %p83 = por %p81, %p82
    %p85 = scmp.ne.s32.totalorder %s68, %s84
    %p86 = scmp.eq.s32.totalorder %s18, 0
    %p87 = por %p85, %p86
    %s88 = ssub.s32 %s19, %s31
    %s89 = ssub.s32 %s20, %s27
    %s90 = sor.u32 %s88, %s89
    %p91 = scmp.eq.s32.totalorder %s90, 0
    %s93 = sadd.s32 %s92, 1
    %s94 = scalar_select %p91, %s92, %s93
    %p97 = pneg %p91
    %p98 = scmp.eq.s32.totalorder %s12, 1
    %p99 = por %p97, %p98
    %p100 = scmp.ne.s32.totalorder %s92, %s95
    %p101 = scmp.eq.s32.totalorder %s12, 0
    %p102 = por %p100, %p101
    %p103 = scmp.ne.s32.totalorder %s92, %s95
    %p104 = scmp.eq.s32.totalorder %s17, 1
    %p105 = por %p103, %p104
    %p106 = scmp.ne.s32.totalorder %s95, %s96
    %p107 = scmp.eq.s32.totalorder %s17, 0
    %p108 = por %p106, %p107
    %p109 = scmp.ne.s32.totalorder %s95, %s96
    %p110 = scmp.eq.s32.totalorder %s18, 1
    %p111 = por %p109, %p110
    %p113 = scmp.ne.s32.totalorder %s96, %s112
    %p114 = scmp.eq.s32.totalorder %s18, 0
    %p115 = por %p113, %p114
    %s116 = ssub.s32 %s19, %s31
    %s117 = ssub.s32 %s20, %s27
    %s118 = sor.u32 %s116, %s117
    %p119 = scmp.eq.s32.totalorder %s118, 0
    %s121 = sadd.s32 %s120, 1
    %s122 = scalar_select %p119, %s120, %s121
    %p125 = pneg %p119
    %p126 = scmp.eq.s32.totalorder %s12, 1
    %p127 = por %p125, %p126
    %p128 = scmp.ne.s32.totalorder %s120, %s123
    %p129 = scmp.eq.s32.totalorder %s12, 0
    %p130 = por %p128, %p129
    %p131 = scmp.ne.s32.totalorder %s120, %s123
    %p132 = scmp.eq.s32.totalorder %s17, 1
    %p133 = por %p131, %p132
    %p134 = scmp.ne.s32.totalorder %s123, %s124
    %p135 = scmp.eq.s32.totalorder %s17, 0
    %p136 = por %p134, %p135
    %p137 = scmp.ne.s32.totalorder %s123, %s124
    %p138 = scmp.eq.s32.totalorder %s18, 1
    %p139 = por %p137, %p138
    %p141 = scmp.ne.s32.totalorder %s124, %s140
    %p142 = scmp.eq.s32.totalorder %s18, 0
    %p143 = por %p141, %p142
    %s145 = sadd.s32 %s144, 1
    %p148 = scmp.eq.s32.totalorder %s12, 1
    %p149 = scmp.ne.s32.totalorder %s144, %s146
    %p150 = scmp.eq.s32.totalorder %s12, 0
    %p151 = por %p149, %p150
    %p152 = scmp.ne.s32.totalorder %s144, %s146
    %p153 = scmp.eq.s32.totalorder %s17, 1
    %p154 = por %p152, %p153
    %p155 = scmp.ne.s32.totalorder %s146, %s147
    %p156 = scmp.eq.s32.totalorder %s17, 0
    %p157 = por %p155, %p156
    %p158 = scmp.ne.s32.totalorder %s146, %s147
    %p159 = scmp.eq.s32.totalorder %s18, 1
    %p160 = por %p158, %p159
    %p162 = scmp.ne.s32.totalorder %s147, %s161
    %p163 = scmp.eq.s32.totalorder %s18, 0
    %p164 = por %p162, %p163
    %s166 = sadd.s32 %s165, 1
    %p169 = scmp.eq.s32.totalorder %s12, 1
    %p170 = scmp.ne.s32.totalorder %s165, %s167
    %p171 = scmp.eq.s32.totalorder %s12, 0
    %p172 = por %p170, %p171
    %p173 = scmp.ne.s32.totalorder %s165, %s167
    %p174 = scmp.eq.s32.totalorder %s17, 1
    %p175 = por %p173, %p174
    %p176 = scmp.ne.s32.totalorder %s167, %s168
    %p177 = scmp.eq.s32.totalorder %s17, 0
    %p178 = por %p176, %p177
    %p179 = scmp.ne.s32.totalorder %s167, %s168
    %p180 = scmp.eq.s32.totalorder %s18, 1
    %p181 = por %p179, %p180
    %p183 = scmp.ne.s32.totalorder %s168, %s182
    %p184 = scmp.eq.s32.totalorder %s18, 0
    %p185 = por %p183, %p184
    %s186 = ssub.s32 %s19, %s31
    %s187 = ssub.s32 %s20, %s27
    %s188 = sor.u32 %s186, %s187
    %p189 = scmp.eq.s32.totalorder %s188, 0
    %s191 = sadd.s32 %s190, 1
    %s192 = scalar_select %p189, %s190, %s191
    %p195 = pneg %p189
    %p196 = scmp.eq.s32.totalorder %s12, 1
    %p197 = por %p195, %p196
    %p198 = scmp.ne.s32.totalorder %s190, %s193
    %p199 = scmp.eq.s32.totalorder %s12, 0
    %p200 = por %p198, %p199
    %p201 = scmp.ne.s32.totalorder %s190, %s193
    %p202 = scmp.eq.s32.totalorder %s17, 1
    %p203 = por %p201, %p202
    %p204 = scmp.ne.s32.totalorder %s193, %s194
    %p205 = scmp.eq.s32.totalorder %s17, 0
    %p206 = por %p204, %p205
    %p207 = scmp.ne.s32.totalorder %s193, %s194
    %p208 = scmp.eq.s32.totalorder %s18, 1
    %p209 = por %p207, %p208
    %p211 = scmp.ne.s32.totalorder %s194, %s210
    %p212 = scmp.eq.s32.totalorder %s18, 0
    %p213 = por %p211, %p212
    %p214 = scmp.le.s32.totalorder 1, %s12
    %p215 = scmp.lt.s32.totalorder %s12, 3
    %p216 = pnand %p214, %p215
    %p217 = pneg %p216
    // Predicated region
    $region9: #{down_sample.1} parent=5 // pred_check
      _
    $region10: #{down_sample.1} parent=5 // pred_check_branch
      %219 = sbr.rel (%p216) target = $region12
    $region11: #{down_sample.1} parent=5 // pred_region
      %s220 = ssub.s32 %s12, 1
      // Predicated region
      $region13: #{down_sample.1} parent=11 // pred_check
        %p221 = pneg %p157
      $region14: #{down_sample.1} parent=11 // pred_check_branch
        %223 = sbr.rel (%p221) target = $region16
      $region15: #{down_sample.1} parent=11 // pred_region
        _
      $region16: #{down_sample.1} parent=11 // pred_fallthru
        _
      // Predicated region
      $region17: #{down_sample.1} parent=11 // pred_check
        %p224 = pneg %p178
      $region18: #{down_sample.1} parent=11 // pred_check_branch
        %226 = sbr.rel (%p224) target = $region20
      $region19: #{down_sample.1} parent=11 // pred_region
        _
      $region20: #{down_sample.1} parent=11 // pred_fallthru
        _
    $region12: #{down_sample.1} parent=5 // pred_fallthru
      _
    %p227 = scmp.lt.s32.totalorder %s12, 2
    // Predicated region
    $region21: #{down_sample.1} parent=5 // pred_check
      %p228 = pneg %p227
    $region22: #{down_sample.1} parent=5 // pred_check_branch
      %230 = sbr.rel (%p228) target = $region24
    $region23: #{down_sample.1} parent=5 // pred_region
      // Predicated region
      $region25: #{down_sample.1} parent=23 // pred_check
        %p231 = pneg %p46
      $region26: #{down_sample.1} parent=23 // pred_check_branch
        %233 = sbr.rel (%p231) target = $region28
      $region27: #{down_sample.1} parent=23 // pred_region
        %s234 = smul.u32 9, %s20
        %p235 = scmp.lt.s32.totalorder %s19, 1
        %s236 = scalar_select %p235, %s19, 1
        %p237 = scmp.lt.s32.totalorder %s234, 8
        %s238 = scalar_select %p237, %s234, 8
        %s239 = smul.addr %s238, 2
        %s240 = smul.addr %s236, 18
        %s241 = sadd.s32 %s239, %s240
        %s242 = smul.addr %s241, 4
        %s243 = scalar_lea.vmem %s0, %s242
        %s244 = smul.u32 9, %s20
      $region28: #{down_sample.1} parent=23 // pred_fallthru
        _
      // Predicated region
      $region29: #{down_sample.1} parent=23 // pred_check
        %p245 = pneg %p74
      $region30: #{down_sample.1} parent=23 // pred_check_branch
        %247 = sbr.rel (%p245) target = $region32
      $region31: #{down_sample.1} parent=23 // pred_region
        %s248 = smul.u32 9, %s20
        %p249 = scmp.lt.s32.totalorder %s19, 1
        %s250 = scalar_select %p249, %s19, 1
        %p251 = scmp.lt.s32.totalorder %s248, 8
        %s252 = scalar_select %p251, %s248, 8
        %s253 = smul.addr %s252, 2
        %s254 = smul.addr %s250, 18
        %s255 = sadd.s32 %s253, %s254
        %s256 = smul.addr %s255, 4
        %s257 = scalar_lea.vmem %s1, %s256
        %s258 = smul.u32 9, %s20
      $region32: #{down_sample.1} parent=23 // pred_fallthru
        _
      // Predicated region
      $region33: #{down_sample.1} parent=23 // pred_check
        %p259 = pneg %p102
      $region34: #{down_sample.1} parent=23 // pred_check_branch
        %261 = sbr.rel (%p259) target = $region36
      $region35: #{down_sample.1} parent=23 // pred_region
        %s262 = smul.u32 9, %s20
        %p263 = scmp.lt.s32.totalorder %s19, 1
        %s264 = scalar_select %p263, %s19, 1
        %p265 = scmp.lt.s32.totalorder %s262, 8
        %s266 = scalar_select %p265, %s262, 8
        %s267 = smul.addr %s266, 2
        %s268 = smul.addr %s264, 18
        %s269 = sadd.s32 %s267, %s268
        %s270 = smul.addr %s269, 4
        %s271 = scalar_lea.vmem %s2, %s270
        %s272 = smul.u32 9, %s20
      $region36: #{down_sample.1} parent=23 // pred_fallthru
        _
      // Predicated region
      $region37: #{down_sample.1} parent=23 // pred_check
        %p273 = pneg %p130
      $region38: #{down_sample.1} parent=23 // pred_check_branch
        %275 = sbr.rel (%p273) target = $region40
      $region39: #{down_sample.1} parent=23 // pred_region
        %s276 = smul.u32 9, %s20
        %p277 = scmp.lt.s32.totalorder %s19, 1
        %s278 = scalar_select %p277, %s19, 1
        %p279 = scmp.lt.s32.totalorder %s276, 8
        %s280 = scalar_select %p279, %s276, 8
        %s281 = smul.addr %s280, 2
        %s282 = smul.addr %s278, 18
        %s283 = sadd.s32 %s281, %s282
        %s284 = smul.addr %s283, 4
        %s285 = scalar_lea.vmem %s3, %s284
        %s286 = smul.u32 9, %s20
      $region40: #{down_sample.1} parent=23 // pred_fallthru
        _
    $region24: #{down_sample.1} parent=5 // pred_fallthru
      _
    %p287 = scmp.le.s32.totalorder 1, %s12
    %p288 = scmp.lt.s32.totalorder %s12, 3
    %p289 = pnand %p287, %p288
    %p290 = pneg %p289
    // Predicated region
    $region41: #{down_sample.1} parent=5 // pred_check
      _
    $region42: #{down_sample.1} parent=5 // pred_check_branch
      %292 = sbr.rel (%p289) target = $region44
    $region43: #{down_sample.1} parent=5 // pred_region
      %s293 = ssub.s32 %s12, 1
      %s294 = smul.u32 9, %s22
      %p295 = scmp.lt.s32.totalorder %s21, 1
      %s296 = scalar_select %p295, %s21, 1
      %p297 = scmp.lt.s32.totalorder %s294, 8
      %s298 = scalar_select %p297, %s294, 8
      %s299 = smul.addr %s298, 2
      %s300 = smul.addr %s296, 18
      %s301 = sadd.s32 %s299, %s300
      %s302 = smul.addr %s301, 4
      %s303 = scalar_lea.vmem %s0, %s302
      %p304 = pneg %p52
      %p305 = pneg %p49
      %s306 = smul.u32 9, %s22
      %p307 = scmp.lt.s32.totalorder %s21, 1
      %s308 = scalar_select %p307, %s21, 1
      %p309 = scmp.lt.s32.totalorder %s306, 8
      %s310 = scalar_select %p309, %s306, 8
      %s311 = smul.addr %s310, 2
      %s312 = smul.addr %s308, 18
      %s313 = sadd.s32 %s311, %s312
      %s314 = smul.addr %s313, 4
      %s315 = scalar_lea.vmem %s1, %s314
      %p316 = pneg %p80
      %p317 = pneg %p77
      %s318 = smul.u32 9, %s22
      %p319 = scmp.lt.s32.totalorder %s21, 1
      %s320 = scalar_select %p319, %s21, 1
      %p321 = scmp.lt.s32.totalorder %s318, 8
      %s322 = scalar_select %p321, %s318, 8
      %s323 = smul.addr %s322, 2
      %s324 = smul.addr %s320, 18
      %s325 = sadd.s32 %s323, %s324
      %s326 = smul.addr %s325, 4
      %s327 = scalar_lea.vmem %s2, %s326
      %p328 = pneg %p108
      %p329 = pneg %p105
      %s330 = smul.u32 9, %s22
      %p331 = scmp.lt.s32.totalorder %s21, 1
      %s332 = scalar_select %p331, %s21, 1
      %p333 = scmp.lt.s32.totalorder %s330, 8
      %s334 = scalar_select %p333, %s330, 8
      %s335 = smul.addr %s334, 2
      %s336 = smul.addr %s332, 18
      %s337 = sadd.s32 %s335, %s336
      %s338 = smul.addr %s337, 4
      %s339 = scalar_lea.vmem %s3, %s338
      %p340 = pneg %p136
      %p341 = pneg %p133
      %p342 = pneg %p157
      %p343 = pneg %p154
      %p344 = pneg %p178
      %p345 = pneg %p175
      %p346 = pneg %p206
      %p347 = pneg %p203
      %s348 = smul.u32 8, %s22
      %p349 = scmp.lt.s32.totalorder %s21, 1
      %s350 = scalar_select %p349, %s21, 1
      %p351 = scmp.lt.s32.totalorder %s348, 7
      %s352 = scalar_select %p351, %s348, 7
      %s353 = smul.addr %s350, 8
      %s354 = sadd.s32 %s352, %s353
      %s355 = smul.addr %s354, 8
      %s356 = scalar_lea.vmem %s6, %s355
      %s357 = smul.u32 9, %s22
      %p358 = scmp.lt.s32.totalorder %s21, 1
      %s359 = scalar_select %p358, %s21, 1
      %p360 = scmp.lt.s32.totalorder %s357, 8
      %s361 = scalar_select %p360, %s357, 8
      %s362 = smul.addr %s361, 2
      %s363 = smul.addr %s359, 18
      %s364 = sadd.s32 %s362, %s363
      %s365 = smul.addr %s364, 4
      %s366 = scalar_lea.vmem %s0, %s365
      %s367 = smul.u32 9, %s22
      %s368 = smul.u32 9, %s22
      %p369 = scmp.lt.s32.totalorder %s21, 1
      %s370 = scalar_select %p369, %s21, 1
      %p371 = scmp.lt.s32.totalorder %s368, 8
      %s372 = scalar_select %p371, %s368, 8
      %s373 = smul.addr %s372, 2
      %s374 = smul.addr %s370, 18
      %s375 = sadd.s32 %s373, %s374
      %s376 = smul.addr %s375, 4
      %s377 = scalar_lea.vmem %s1, %s376
      %s378 = smul.u32 9, %s22
      %s379 = smul.u32 9, %s22
      %p380 = scmp.lt.s32.totalorder %s21, 1
      %s381 = scalar_select %p380, %s21, 1
      %p382 = scmp.lt.s32.totalorder %s379, 8
      %s383 = scalar_select %p382, %s379, 8
      %s384 = smul.addr %s383, 2
      %s385 = smul.addr %s381, 18
      %s386 = sadd.s32 %s384, %s385
      %s387 = smul.addr %s386, 4
      %s388 = scalar_lea.vmem %s2, %s387
      %s389 = smul.u32 9, %s22
      %s390 = smul.u32 9, %s22
      %p391 = scmp.lt.s32.totalorder %s21, 1
      %s392 = scalar_select %p391, %s21, 1
      %p393 = scmp.lt.s32.totalorder %s390, 8
      %s394 = scalar_select %p393, %s390, 8
      %s395 = smul.addr %s394, 2
      %s396 = smul.addr %s392, 18
      %s397 = sadd.s32 %s395, %s396
      %s398 = smul.addr %s397, 4
      %s399 = scalar_lea.vmem %s3, %s398
      %s400 = smul.u32 9, %s22
      %s401 = smul.u32 8, %s22
      %p402 = scmp.lt.s32.totalorder %s21, 1
      %s403 = scalar_select %p402, %s21, 1
      %p404 = scmp.lt.s32.totalorder %s401, 7
      %s405 = scalar_select %p404, %s401, 7
      %s406 = smul.addr %s403, 8
      %s407 = sadd.s32 %s405, %s406
      %s408 = smul.addr %s407, 8
      %s409 = scalar_lea.vmem %s6, %s408
      %s410 = smul.u32 8, %s22
      %v412 = vld [vmem:[%s366] sm:$0xf]
      %v413 = vld [vmem:[%s366 + $0x8] sm:$0xf]
      %v414 = vld [vmem:[%s366 + $0x10] sm:$0xf]
      %v415 = vld [vmem:[%s366 + $0x18] sm:$0xf]
      %v416 = vld [vmem:[%s366 + $0x20] sm:$0xf]
      %v417 = vld [vmem:[%s366 + $0x28] sm:$0xf]
      %v418 = vld [vmem:[%s366 + $0x30] sm:$0xf]
      %v419 = vld [vmem:[%s366 + $0x38] sm:$0xf]
      %vm420 = vcmask 27648
      %421 = vst.msk [vmem:[#allocation2] sm:$0xf] %vm420, %v412
      %422 = vst.msk [vmem:[#allocation2 + $0x4] sm:$0xf] %vm420, %v413
      %423 = vst.msk [vmem:[#allocation2 + $0x8] sm:$0xf] %vm420, %v414
      %424 = vst.msk [vmem:[#allocation2 + $0xc] sm:$0xf] %vm420, %v415
      %425 = vst.msk [vmem:[#allocation2 + $0x10] sm:$0xf] %vm420, %v416
      %426 = vst.msk [vmem:[#allocation2 + $0x14] sm:$0xf] %vm420, %v417
      %427 = vst.msk [vmem:[#allocation2 + $0x18] sm:$0xf] %vm420, %v418
      %428 = vst.msk [vmem:[#allocation2 + $0x1c] sm:$0xf] %vm420, %v419
      %v429 = vld [vmem:[%s377] sm:$0xf]
      %v430 = vld [vmem:[%s377 + $0x8] sm:$0xf]
      %v431 = vld [vmem:[%s377 + $0x10] sm:$0xf]
      %v432 = vld [vmem:[%s377 + $0x18] sm:$0xf]
      %v433 = vld [vmem:[%s377 + $0x20] sm:$0xf]
      %v434 = vld [vmem:[%s377 + $0x28] sm:$0xf]
      %v435 = vld [vmem:[%s377 + $0x30] sm:$0xf]
      %v436 = vld [vmem:[%s377 + $0x38] sm:$0xf]
      %445 = vrot.lane.b32.xlu0 %v429, 4
      %v446 = vpop.permute.xlu0 %445
      %447 = vrot.lane.b32.xlu0 %v430, 4
      %v448 = vpop.permute.xlu0 %447
      %449 = vrot.lane.b32.xlu0 %v431, 4
      %v450 = vpop.permute.xlu0 %449
      %451 = vrot.lane.b32.xlu0 %v432, 4
      %v452 = vpop.permute.xlu0 %451
      %453 = vrot.lane.b32.xlu0 %v433, 4
      %v454 = vpop.permute.xlu0 %453
      %455 = vrot.lane.b32.xlu0 %v434, 4
      %v456 = vpop.permute.xlu0 %455
      %457 = vrot.lane.b32.xlu0 %v435, 4
      %v458 = vpop.permute.xlu0 %457
      %459 = vrot.lane.b32.xlu0 %v436, 4
      %v460 = vpop.permute.xlu0 %459
      %vm469 = vcmask 60448
      %470 = vst.msk [vmem:[#allocation2] sm:$0xf] %vm469, %v446
      %471 = vst.msk [vmem:[#allocation2 + $0x4] sm:$0xf] %vm469, %v448
      %472 = vst.msk [vmem:[#allocation2 + $0x8] sm:$0xf] %vm469, %v450
      %473 = vst.msk [vmem:[#allocation2 + $0xc] sm:$0xf] %vm469, %v452
      %474 = vst.msk [vmem:[#allocation2 + $0x10] sm:$0xf] %vm469, %v454
      %475 = vst.msk [vmem:[#allocation2 + $0x14] sm:$0xf] %vm469, %v456
      %476 = vst.msk [vmem:[#allocation2 + $0x18] sm:$0xf] %vm469, %v458
      %477 = vst.msk [vmem:[#allocation2 + $0x1c] sm:$0xf] %vm469, %v460
      %v478 = vld [vmem:[%s366] sm:$0xf]
      %v479 = vld [vmem:[%s366 + $0x4] sm:$0x1]
      %v480 = vld [vmem:[%s366 + $0x8] sm:$0xf]
      %v481 = vld [vmem:[%s366 + $0xc] sm:$0x1]
      %v482 = vld [vmem:[%s366 + $0x10] sm:$0xf]
      %v483 = vld [vmem:[%s366 + $0x14] sm:$0x1]
      %v484 = vld [vmem:[%s366 + $0x18] sm:$0xf]
      %v485 = vld [vmem:[%s366 + $0x1c] sm:$0x1]
      %v486 = vld [vmem:[%s366 + $0x20] sm:$0xf]
      %v487 = vld [vmem:[%s366 + $0x24] sm:$0x1]
      %v488 = vld [vmem:[%s366 + $0x28] sm:$0xf]
      %v489 = vld [vmem:[%s366 + $0x2c] sm:$0x1]
      %v490 = vld [vmem:[%s366 + $0x30] sm:$0xf]
      %v491 = vld [vmem:[%s366 + $0x34] sm:$0x1]
      %v492 = vld [vmem:[%s366 + $0x38] sm:$0xf]
      %v493 = vld [vmem:[%s366 + $0x3c] sm:$0x1]
      %vm494 = vsmask.f32 3328
      %vm495 = vsmask.f32 7440
      %vm496 = vmor %vm494, %vm495
      %v498 = vshrl.u32 %v478, 16
      %v500 = vrot.slane %v498, 4
      %v501 = vshll.u32 %v478, 16
      %v503 = vrot.slane %v501, 5
      %v504 = vor.u32 %v500, %v503
      %v505 = vrot.slane %v504, 4
      %v507 = vshll.u32 %v479, 16
      %v509 = vrot.slane %v507, 5
      %v510 = vsel %vm496, %v505, %v509
      %v512 = vshrl.u32 %v480, 16
      %v514 = vrot.slane %v512, 4
      %v515 = vshll.u32 %v480, 16
      %v517 = vrot.slane %v515, 5
      %v518 = vor.u32 %v514, %v517
      %v519 = vrot.slane %v518, 4
      %v521 = vshll.u32 %v481, 16
      %v523 = vrot.slane %v521, 5
      %v524 = vsel %vm496, %v519, %v523
      %v526 = vshrl.u32 %v482, 16
      %v528 = vrot.slane %v526, 4
      %v529 = vshll.u32 %v482, 16
      %v531 = vrot.slane %v529, 5
      %v532 = vor.u32 %v528, %v531
      %v533 = vrot.slane %v532, 4
      %v535 = vshll.u32 %v483, 16
      %v537 = vrot.slane %v535, 5
      %v538 = vsel %vm496, %v533, %v537
      %v540 = vshrl.u32 %v484, 16
      %v542 = vrot.slane %v540, 4
      %v543 = vshll.u32 %v484, 16
      %v545 = vrot.slane %v543, 5
      %v546 = vor.u32 %v542, %v545
      %v547 = vrot.slane %v546, 4
      %v549 = vshll.u32 %v485, 16
      %v551 = vrot.slane %v549, 5
      %v552 = vsel %vm496, %v547, %v551
      %v554 = vshrl.u32 %v486, 16
      %v556 = vrot.slane %v554, 4
      %v557 = vshll.u32 %v486, 16
      %v559 = vrot.slane %v557, 5
      %v560 = vor.u32 %v556, %v559
      %v561 = vrot.slane %v560, 4
      %v563 = vshll.u32 %v487, 16
      %v565 = vrot.slane %v563, 5
      %v566 = vsel %vm496, %v561, %v565
      %v568 = vshrl.u32 %v488, 16
      %v570 = vrot.slane %v568, 4
      %v571 = vshll.u32 %v488, 16
      %v573 = vrot.slane %v571, 5
      %v574 = vor.u32 %v570, %v573
      %v575 = vrot.slane %v574, 4
      %v577 = vshll.u32 %v489, 16
      %v579 = vrot.slane %v577, 5
      %v580 = vsel %vm496, %v575, %v579
      %v582 = vshrl.u32 %v490, 16
      %v584 = vrot.slane %v582, 4
      %v585 = vshll.u32 %v490, 16
      %v587 = vrot.slane %v585, 5
      %v588 = vor.u32 %v584, %v587
      %v589 = vrot.slane %v588, 4
      %v591 = vshll.u32 %v491, 16
      %v593 = vrot.slane %v591, 5
      %v594 = vsel %vm496, %v589, %v593
      %v596 = vshrl.u32 %v492, 16
      %v598 = vrot.slane %v596, 4
      %v599 = vshll.u32 %v492, 16
      %v601 = vrot.slane %v599, 5
      %v602 = vor.u32 %v598, %v601
      %v603 = vrot.slane %v602, 4
      %v605 = vshll.u32 %v493, 16
      %v607 = vrot.slane %v605, 5
      %v608 = vsel %vm496, %v603, %v607
      %609 = vrot.lane.b32.xlu0 %v510, 8
      %v610 = vpop.permute.xlu0 %609
      %611 = vrot.lane.b32.xlu0 %v524, 8
      %v612 = vpop.permute.xlu0 %611
      %613 = vrot.lane.b32.xlu0 %v538, 8
      %v614 = vpop.permute.xlu0 %613
      %615 = vrot.lane.b32.xlu0 %v552, 8
      %v616 = vpop.permute.xlu0 %615
      %617 = vrot.lane.b32.xlu0 %v566, 8
      %v618 = vpop.permute.xlu0 %617
      %619 = vrot.lane.b32.xlu0 %v580, 8
      %v620 = vpop.permute.xlu0 %619
      %621 = vrot.lane.b32.xlu0 %v594, 8
      %v622 = vpop.permute.xlu0 %621
      %623 = vrot.lane.b32.xlu0 %v608, 8
      %v624 = vpop.permute.xlu0 %623
      %vm633 = vcmask 93248
      %634 = vst.msk [vmem:[#allocation2] sm:$0xf] %vm633, %v610
      %635 = vst.msk [vmem:[#allocation2 + $0x4] sm:$0xf] %vm633, %v612
      %636 = vst.msk [vmem:[#allocation2 + $0x8] sm:$0xf] %vm633, %v614
      %637 = vst.msk [vmem:[#allocation2 + $0xc] sm:$0xf] %vm633, %v616
      %638 = vst.msk [vmem:[#allocation2 + $0x10] sm:$0xf] %vm633, %v618
      %639 = vst.msk [vmem:[#allocation2 + $0x14] sm:$0xf] %vm633, %v620
      %640 = vst.msk [vmem:[#allocation2 + $0x18] sm:$0xf] %vm633, %v622
      %641 = vst.msk [vmem:[#allocation2 + $0x1c] sm:$0xf] %vm633, %v624
      %v642 = vld [vmem:[%s388] sm:$0xf]
      %v643 = vld [vmem:[%s388 + $0x8] sm:$0xf]
      %v644 = vld [vmem:[%s388 + $0x10] sm:$0xf]
      %v645 = vld [vmem:[%s388 + $0x18] sm:$0xf]
      %v646 = vld [vmem:[%s388 + $0x20] sm:$0xf]
      %v647 = vld [vmem:[%s388 + $0x28] sm:$0xf]
      %v648 = vld [vmem:[%s388 + $0x30] sm:$0xf]
      %v649 = vld [vmem:[%s388 + $0x38] sm:$0xf]
      %658 = vrot.lane.b32.xlu0 %v642, 12
      %v659 = vpop.permute.xlu0 %658
      %660 = vrot.lane.b32.xlu0 %v643, 12
      %v661 = vpop.permute.xlu0 %660
      %662 = vrot.lane.b32.xlu0 %v644, 12
      %v663 = vpop.permute.xlu0 %662
      %664 = vrot.lane.b32.xlu0 %v645, 12
      %v665 = vpop.permute.xlu0 %664
      %666 = vrot.lane.b32.xlu0 %v646, 12
      %v667 = vpop.permute.xlu0 %666
      %668 = vrot.lane.b32.xlu0 %v647, 12
      %v669 = vpop.permute.xlu0 %668
      %670 = vrot.lane.b32.xlu0 %v648, 12
      %v671 = vpop.permute.xlu0 %670
      %672 = vrot.lane.b32.xlu0 %v649, 12
      %v673 = vpop.permute.xlu0 %672
      %vm682 = vcmask 126048
      %683 = vst.msk [vmem:[#allocation2] sm:$0xf] %vm682, %v659
      %684 = vst.msk [vmem:[#allocation2 + $0x4] sm:$0xf] %vm682, %v661
      %685 = vst.msk [vmem:[#allocation2 + $0x8] sm:$0xf] %vm682, %v663
      %686 = vst.msk [vmem:[#allocation2 + $0xc] sm:$0xf] %vm682, %v665
      %687 = vst.msk [vmem:[#allocation2 + $0x10] sm:$0xf] %vm682, %v667
      %688 = vst.msk [vmem:[#allocation2 + $0x14] sm:$0xf] %vm682, %v669
      %689 = vst.msk [vmem:[#allocation2 + $0x18] sm:$0xf] %vm682, %v671
      %690 = vst.msk [vmem:[#allocation2 + $0x1c] sm:$0xf] %vm682, %v673
      %v691 = vld [vmem:[%s399] sm:$0xf]
      %v692 = vld [vmem:[%s399 + $0x8] sm:$0xf]
      %v693 = vld [vmem:[%s399 + $0x10] sm:$0xf]
      %v694 = vld [vmem:[%s399 + $0x18] sm:$0xf]
      %v695 = vld [vmem:[%s399 + $0x20] sm:$0xf]
      %v696 = vld [vmem:[%s399 + $0x28] sm:$0xf]
      %v697 = vld [vmem:[%s399 + $0x30] sm:$0xf]
      %v698 = vld [vmem:[%s399 + $0x38] sm:$0xf]
      %707 = vrot.lane.b32.xlu0 %v691, 16
      %v708 = vpop.permute.xlu0 %707
      %709 = vrot.lane.b32.xlu0 %v692, 16
      %v710 = vpop.permute.xlu0 %709
      %711 = vrot.lane.b32.xlu0 %v693, 16
      %v712 = vpop.permute.xlu0 %711
      %713 = vrot.lane.b32.xlu0 %v694, 16
      %v714 = vpop.permute.xlu0 %713
      %715 = vrot.lane.b32.xlu0 %v695, 16
      %v716 = vpop.permute.xlu0 %715
      %717 = vrot.lane.b32.xlu0 %v696, 16
      %v718 = vpop.permute.xlu0 %717
      %719 = vrot.lane.b32.xlu0 %v697, 16
      %v720 = vpop.permute.xlu0 %719
      %721 = vrot.lane.b32.xlu0 %v698, 16
      %v722 = vpop.permute.xlu0 %721
      %vm731 = vcmask 158848
      %732 = vst.msk [vmem:[#allocation2] sm:$0xf] %vm731, %v708
      %733 = vst.msk [vmem:[#allocation2 + $0x4] sm:$0xf] %vm731, %v710
      %734 = vst.msk [vmem:[#allocation2 + $0x8] sm:$0xf] %vm731, %v712
      %735 = vst.msk [vmem:[#allocation2 + $0xc] sm:$0xf] %vm731, %v714
      %736 = vst.msk [vmem:[#allocation2 + $0x10] sm:$0xf] %vm731, %v716
      %737 = vst.msk [vmem:[#allocation2 + $0x14] sm:$0xf] %vm731, %v718
      %738 = vst.msk [vmem:[#allocation2 + $0x18] sm:$0xf] %vm731, %v720
      %739 = vst.msk [vmem:[#allocation2 + $0x1c] sm:$0xf] %vm731, %v722
      %v740 = vld [vmem:[%s388] sm:$0xf]
      %v741 = vld [vmem:[%s388 + $0x4] sm:$0x1]
      %v742 = vld [vmem:[%s388 + $0x8] sm:$0xf]
      %v743 = vld [vmem:[%s388 + $0xc] sm:$0x1]
      %v744 = vld [vmem:[%s388 + $0x10] sm:$0xf]
      %v745 = vld [vmem:[%s388 + $0x14] sm:$0x1]
      %v746 = vld [vmem:[%s388 + $0x18] sm:$0xf]
      %v747 = vld [vmem:[%s388 + $0x1c] sm:$0x1]
      %v748 = vld [vmem:[%s388 + $0x20] sm:$0xf]
      %v749 = vld [vmem:[%s388 + $0x24] sm:$0x1]
      %v750 = vld [vmem:[%s388 + $0x28] sm:$0xf]
      %v751 = vld [vmem:[%s388 + $0x2c] sm:$0x1]
      %v752 = vld [vmem:[%s388 + $0x30] sm:$0xf]
      %v753 = vld [vmem:[%s388 + $0x34] sm:$0x1]
      %v754 = vld [vmem:[%s388 + $0x38] sm:$0xf]
      %v755 = vld [vmem:[%s388 + $0x3c] sm:$0x1]
      %v757 = vshrl.u32 %v740, 16
      %v759 = vrot.slane %v757, 4
      %v760 = vshll.u32 %v740, 16
      %v762 = vrot.slane %v760, 5
      %v763 = vor.u32 %v759, %v762
      %v764 = vrot.slane %v763, 4
      %v766 = vshll.u32 %v741, 16
      %v768 = vrot.slane %v766, 5
      %v769 = vsel %vm496, %v764, %v768
      %v771 = vshrl.u32 %v742, 16
      %v773 = vrot.slane %v771, 4
      %v774 = vshll.u32 %v742, 16
      %v776 = vrot.slane %v774, 5
      %v777 = vor.u32 %v773, %v776
      %v778 = vrot.slane %v777, 4
      %v780 = vshll.u32 %v743, 16
      %v782 = vrot.slane %v780, 5
      %v783 = vsel %vm496, %v778, %v782
      %v785 = vshrl.u32 %v744, 16
      %v787 = vrot.slane %v785, 4
      %v788 = vshll.u32 %v744, 16
      %v790 = vrot.slane %v788, 5
      %v791 = vor.u32 %v787, %v790
      %v792 = vrot.slane %v791, 4
      %v794 = vshll.u32 %v745, 16
      %v796 = vrot.slane %v794, 5
      %v797 = vsel %vm496, %v792, %v796
      %v799 = vshrl.u32 %v746, 16
      %v801 = vrot.slane %v799, 4
      %v802 = vshll.u32 %v746, 16
      %v804 = vrot.slane %v802, 5
      %v805 = vor.u32 %v801, %v804
      %v806 = vrot.slane %v805, 4
      %v808 = vshll.u32 %v747, 16
      %v810 = vrot.slane %v808, 5
      %v811 = vsel %vm496, %v806, %v810
      %v813 = vshrl.u32 %v748, 16
      %v815 = vrot.slane %v813, 4
      %v816 = vshll.u32 %v748, 16
      %v818 = vrot.slane %v816, 5
      %v819 = vor.u32 %v815, %v818
      %v820 = vrot.slane %v819, 4
      %v822 = vshll.u32 %v749, 16
      %v824 = vrot.slane %v822, 5
      %v825 = vsel %vm496, %v820, %v824
      %v827 = vshrl.u32 %v750, 16
      %v829 = vrot.slane %v827, 4
      %v830 = vshll.u32 %v750, 16
      %v832 = vrot.slane %v830, 5
      %v833 = vor.u32 %v829, %v832
      %v834 = vrot.slane %v833, 4
      %v836 = vshll.u32 %v751, 16
      %v838 = vrot.slane %v836, 5
      %v839 = vsel %vm496, %v834, %v838
      %v841 = vshrl.u32 %v752, 16
      %v843 = vrot.slane %v841, 4
      %v844 = vshll.u32 %v752, 16
      %v846 = vrot.slane %v844, 5
      %v847 = vor.u32 %v843, %v846
      %v848 = vrot.slane %v847, 4
      %v850 = vshll.u32 %v753, 16
      %v852 = vrot.slane %v850, 5
      %v853 = vsel %vm496, %v848, %v852
      %v855 = vshrl.u32 %v754, 16
      %v857 = vrot.slane %v855, 4
      %v858 = vshll.u32 %v754, 16
      %v860 = vrot.slane %v858, 5
      %v861 = vor.u32 %v857, %v860
      %v862 = vrot.slane %v861, 4
      %v864 = vshll.u32 %v755, 16
      %v866 = vrot.slane %v864, 5
      %v867 = vsel %vm496, %v862, %v866
      %868 = vrot.lane.b32.xlu0 %v769, 20
      %v869 = vpop.permute.xlu0 %868
      %870 = vrot.lane.b32.xlu0 %v783, 20
      %v871 = vpop.permute.xlu0 %870
      %872 = vrot.lane.b32.xlu0 %v797, 20
      %v873 = vpop.permute.xlu0 %872
      %874 = vrot.lane.b32.xlu0 %v811, 20
      %v875 = vpop.permute.xlu0 %874
      %876 = vrot.lane.b32.xlu0 %v825, 20
      %v877 = vpop.permute.xlu0 %876
      %878 = vrot.lane.b32.xlu0 %v839, 20
      %v879 = vpop.permute.xlu0 %878
      %880 = vrot.lane.b32.xlu0 %v853, 20
      %v881 = vpop.permute.xlu0 %880
      %882 = vrot.lane.b32.xlu0 %v867, 20
      %v883 = vpop.permute.xlu0 %882
      %vm892 = vcmask 191648
      %893 = vst.msk [vmem:[#allocation2] sm:$0xf] %vm892, %v869
      %894 = vst.msk [vmem:[#allocation2 + $0x4] sm:$0xf] %vm892, %v871
      %895 = vst.msk [vmem:[#allocation2 + $0x8] sm:$0xf] %vm892, %v873
      %896 = vst.msk [vmem:[#allocation2 + $0xc] sm:$0xf] %vm892, %v875
      %897 = vst.msk [vmem:[#allocation2 + $0x10] sm:$0xf] %vm892, %v877
      %898 = vst.msk [vmem:[#allocation2 + $0x14] sm:$0xf] %vm892, %v879
      %899 = vst.msk [vmem:[#allocation2 + $0x18] sm:$0xf] %vm892, %v881
      %900 = vst.msk [vmem:[#allocation2 + $0x1c] sm:$0xf] %vm892, %v883
      %s901 = scalar_lea.vmem %s366, 8
      %v902 = vld [vmem:[%s901] sm:$0xf]
      %v903 = vld [vmem:[%s901 + $0x8] sm:$0xf]
      %v904 = vld [vmem:[%s901 + $0x10] sm:$0xf]
      %v905 = vld [vmem:[%s901 + $0x18] sm:$0xf]
      %v906 = vld [vmem:[%s901 + $0x20] sm:$0xf]
      %v907 = vld [vmem:[%s901 + $0x28] sm:$0xf]
      %v908 = vld [vmem:[%s901 + $0x30] sm:$0xf]
      %v909 = vld [vmem:[%s901 + $0x38] sm:$0xf]
      %918 = vrot.lane.b32.xlu0 %v902, 24
      %v919 = vpop.permute.xlu0 %918
      %920 = vrot.lane.b32.xlu0 %v903, 24
      %v921 = vpop.permute.xlu0 %920
      %922 = vrot.lane.b32.xlu0 %v904, 24
      %v923 = vpop.permute.xlu0 %922
      %924 = vrot.lane.b32.xlu0 %v905, 24
      %v925 = vpop.permute.xlu0 %924
      %926 = vrot.lane.b32.xlu0 %v906, 24
      %v927 = vpop.permute.xlu0 %926
      %928 = vrot.lane.b32.xlu0 %v907, 24
      %v929 = vpop.permute.xlu0 %928
      %930 = vrot.lane.b32.xlu0 %v908, 24
      %v931 = vpop.permute.xlu0 %930
      %932 = vrot.lane.b32.xlu0 %v909, 24
      %v933 = vpop.permute.xlu0 %932
      %vm942 = vcmask 224448
      %943 = vst.msk [vmem:[#allocation2] sm:$0xf] %vm942, %v919
      %944 = vst.msk [vmem:[#allocation2 + $0x4] sm:$0xf] %vm942, %v921
      %945 = vst.msk [vmem:[#allocation2 + $0x8] sm:$0xf] %vm942, %v923
      %946 = vst.msk [vmem:[#allocation2 + $0xc] sm:$0xf] %vm942, %v925
      %947 = vst.msk [vmem:[#allocation2 + $0x10] sm:$0xf] %vm942, %v927
      %948 = vst.msk [vmem:[#allocation2 + $0x14] sm:$0xf] %vm942, %v929
      %949 = vst.msk [vmem:[#allocation2 + $0x18] sm:$0xf] %vm942, %v931
      %950 = vst.msk [vmem:[#allocation2 + $0x1c] sm:$0xf] %vm942, %v933
      %s951 = scalar_lea.vmem %s377, 8
      %v952 = vld [vmem:[%s951] sm:$0xf]
      %v953 = vld [vmem:[%s951 + $0x8] sm:$0xf]
      %v954 = vld [vmem:[%s951 + $0x10] sm:$0xf]
      %v955 = vld [vmem:[%s951 + $0x18] sm:$0xf]
      %v956 = vld [vmem:[%s951 + $0x20] sm:$0xf]
      %v957 = vld [vmem:[%s951 + $0x28] sm:$0xf]
      %v958 = vld [vmem:[%s951 + $0x30] sm:$0xf]
      %v959 = vld [vmem:[%s951 + $0x38] sm:$0xf]
      %968 = vrot.lane.b32.xlu0 %v952, 28
      %v969 = vpop.permute.xlu0 %968
      %970 = vrot.lane.b32.xlu0 %v953, 28
      %v971 = vpop.permute.xlu0 %970
      %972 = vrot.lane.b32.xlu0 %v954, 28
      %v973 = vpop.permute.xlu0 %972
      %974 = vrot.lane.b32.xlu0 %v955, 28
      %v975 = vpop.permute.xlu0 %974
      %976 = vrot.lane.b32.xlu0 %v956, 28
      %v977 = vpop.permute.xlu0 %976
      %978 = vrot.lane.b32.xlu0 %v957, 28
      %v979 = vpop.permute.xlu0 %978
      %980 = vrot.lane.b32.xlu0 %v958, 28
      %v981 = vpop.permute.xlu0 %980
      %982 = vrot.lane.b32.xlu0 %v959, 28
      %v983 = vpop.permute.xlu0 %982
      %vm992 = vcmask 257248
      %993 = vst.msk [vmem:[#allocation2] sm:$0xf] %vm992, %v969
      %994 = vst.msk [vmem:[#allocation2 + $0x4] sm:$0xf] %vm992, %v971
      %995 = vst.msk [vmem:[#allocation2 + $0x8] sm:$0xf] %vm992, %v973
      %996 = vst.msk [vmem:[#allocation2 + $0xc] sm:$0xf] %vm992, %v975
      %997 = vst.msk [vmem:[#allocation2 + $0x10] sm:$0xf] %vm992, %v977
      %998 = vst.msk [vmem:[#allocation2 + $0x14] sm:$0xf] %vm992, %v979
      %999 = vst.msk [vmem:[#allocation2 + $0x18] sm:$0xf] %vm992, %v981
      %1000 = vst.msk [vmem:[#allocation2 + $0x1c] sm:$0xf] %vm992, %v983
      %v1001 = vld [vmem:[%s901] sm:$0xf]
      %v1002 = vld [vmem:[%s901 + $0x4] sm:$0x1]
      %v1003 = vld [vmem:[%s901 + $0x8] sm:$0xf]
      %v1004 = vld [vmem:[%s901 + $0xc] sm:$0x1]
      %v1005 = vld [vmem:[%s901 + $0x10] sm:$0xf]
      %v1006 = vld [vmem:[%s901 + $0x14] sm:$0x1]
      %v1007 = vld [vmem:[%s901 + $0x18] sm:$0xf]
      %v1008 = vld [vmem:[%s901 + $0x1c] sm:$0x1]
      %v1009 = vld [vmem:[%s901 + $0x20] sm:$0xf]
      %v1010 = vld [vmem:[%s901 + $0x24] sm:$0x1]
      %v1011 = vld [vmem:[%s901 + $0x28] sm:$0xf]
      %v1012 = vld [vmem:[%s901 + $0x2c] sm:$0x1]
      %v1013 = vld [vmem:[%s901 + $0x30] sm:$0xf]
      %v1014 = vld [vmem:[%s901 + $0x34] sm:$0x1]
      %v1015 = vld [vmem:[%s901 + $0x38] sm:$0xf]
      %v1016 = vld [vmem:[%s901 + $0x3c] sm:$0x1]
      %v1018 = vshrl.u32 %v1001, 16
      %v1020 = vrot.slane %v1018, 4
      %v1021 = vshll.u32 %v1001, 16
      %v1023 = vrot.slane %v1021, 5
      %v1024 = vor.u32 %v1020, %v1023
      %v1025 = vrot.slane %v1024, 4
      %v1027 = vshll.u32 %v1002, 16
      %v1029 = vrot.slane %v1027, 5
      %v1030 = vsel %vm496, %v1025, %v1029
      %v1032 = vshrl.u32 %v1003, 16
      %v1034 = vrot.slane %v1032, 4
      %v1035 = vshll.u32 %v1003, 16
      %v1037 = vrot.slane %v1035, 5
      %v1038 = vor.u32 %v1034, %v1037
      %v1039 = vrot.slane %v1038, 4
      %v1041 = vshll.u32 %v1004, 16
      %v1043 = vrot.slane %v1041, 5
      %v1044 = vsel %vm496, %v1039, %v1043
      %v1046 = vshrl.u32 %v1005, 16
      %v1048 = vrot.slane %v1046, 4
      %v1049 = vshll.u32 %v1005, 16
      %v1051 = vrot.slane %v1049, 5
      %v1052 = vor.u32 %v1048, %v1051
      %v1053 = vrot.slane %v1052, 4
      %v1055 = vshll.u32 %v1006, 16
      %v1057 = vrot.slane %v1055, 5
      %v1058 = vsel %vm496, %v1053, %v1057
      %v1060 = vshrl.u32 %v1007, 16
      %v1062 = vrot.slane %v1060, 4
      %v1063 = vshll.u32 %v1007, 16
      %v1065 = vrot.slane %v1063, 5
      %v1066 = vor.u32 %v1062, %v1065
      %v1067 = vrot.slane %v1066, 4
      %v1069 = vshll.u32 %v1008, 16
      %v1071 = vrot.slane %v1069, 5
      %v1072 = vsel %vm496, %v1067, %v1071
      %v1074 = vshrl.u32 %v1009, 16
      %v1076 = vrot.slane %v1074, 4
      %v1077 = vshll.u32 %v1009, 16
      %v1079 = vrot.slane %v1077, 5
      %v1080 = vor.u32 %v1076, %v1079
      %v1081 = vrot.slane %v1080, 4
      %v1083 = vshll.u32 %v1010, 16
      %v1085 = vrot.slane %v1083, 5
      %v1086 = vsel %vm496, %v1081, %v1085
      %v1088 = vshrl.u32 %v1011, 16
      %v1090 = vrot.slane %v1088, 4
      %v1091 = vshll.u32 %v1011, 16
      %v1093 = vrot.slane %v1091, 5
      %v1094 = vor.u32 %v1090, %v1093
      %v1095 = vrot.slane %v1094, 4
      %v1097 = vshll.u32 %v1012, 16
      %v1099 = vrot.slane %v1097, 5
      %v1100 = vsel %vm496, %v1095, %v1099
      %v1102 = vshrl.u32 %v1013, 16
      %v1104 = vrot.slane %v1102, 4
      %v1105 = vshll.u32 %v1013, 16
      %v1107 = vrot.slane %v1105, 5
      %v1108 = vor.u32 %v1104, %v1107
      %v1109 = vrot.slane %v1108, 4
      %v1111 = vshll.u32 %v1014, 16
      %v1113 = vrot.slane %v1111, 5
      %v1114 = vsel %vm496, %v1109, %v1113
      %v1116 = vshrl.u32 %v1015, 16
      %v1118 = vrot.slane %v1116, 4
      %v1119 = vshll.u32 %v1015, 16
      %v1121 = vrot.slane %v1119, 5
      %v1122 = vor.u32 %v1118, %v1121
      %v1123 = vrot.slane %v1122, 4
      %v1125 = vshll.u32 %v1016, 16
      %v1127 = vrot.slane %v1125, 5
      %v1128 = vsel %vm496, %v1123, %v1127
      %1129 = vrot.lane.b32.xlu0 %v1030, 32
      %v1130 = vpop.permute.xlu0 %1129
      %1131 = vrot.lane.b32.xlu0 %v1044, 32
      %v1132 = vpop.permute.xlu0 %1131
      %1133 = vrot.lane.b32.xlu0 %v1058, 32
      %v1134 = vpop.permute.xlu0 %1133
      %1135 = vrot.lane.b32.xlu0 %v1072, 32
      %v1136 = vpop.permute.xlu0 %1135
      %1137 = vrot.lane.b32.xlu0 %v1086, 32
      %v1138 = vpop.permute.xlu0 %1137
      %1139 = vrot.lane.b32.xlu0 %v1100, 32
      %v1140 = vpop.permute.xlu0 %1139
      %1141 = vrot.lane.b32.xlu0 %v1114, 32
      %v1142 = vpop.permute.xlu0 %1141
      %1143 = vrot.lane.b32.xlu0 %v1128, 32
      %v1144 = vpop.permute.xlu0 %1143
      %vm1153 = vcmask 290048
      %1154 = vst.msk [vmem:[#allocation2] sm:$0xf] %vm1153, %v1130
      %1155 = vst.msk [vmem:[#allocation2 + $0x4] sm:$0xf] %vm1153, %v1132
      %1156 = vst.msk [vmem:[#allocation2 + $0x8] sm:$0xf] %vm1153, %v1134
      %1157 = vst.msk [vmem:[#allocation2 + $0xc] sm:$0xf] %vm1153, %v1136
      %1158 = vst.msk [vmem:[#allocation2 + $0x10] sm:$0xf] %vm1153, %v1138
      %1159 = vst.msk [vmem:[#allocation2 + $0x14] sm:$0xf] %vm1153, %v1140
      %1160 = vst.msk [vmem:[#allocation2 + $0x18] sm:$0xf] %vm1153, %v1142
      %1161 = vst.msk [vmem:[#allocation2 + $0x1c] sm:$0xf] %vm1153, %v1144
      %v1162 = vld [vmem:[#allocation2] sm:$0xf]
      %v1163 = vld [vmem:[#allocation2 + $0x4] sm:$0xf]
      %v1164 = vld [vmem:[#allocation2 + $0x8] sm:$0xf]
      %v1165 = vld [vmem:[#allocation2 + $0xc] sm:$0xf]
      %v1166 = vld [vmem:[#allocation2 + $0x10] sm:$0xf]
      %v1167 = vld [vmem:[#allocation2 + $0x14] sm:$0xf]
      %v1168 = vld [vmem:[#allocation2 + $0x18] sm:$0xf]
      %v1169 = vld [vmem:[#allocation2 + $0x1c] sm:$0xf]
      %v1170 = vld [vmem:[%s4] sm:$0xf]
      %v1171 = vld [vmem:[%s4 + $0x4] sm:$0xf]
      %v1172 = vld [vmem:[%s4 + $0x8] sm:$0xf]
      %v1173 = vld [vmem:[%s4 + $0xc] sm:$0xf]
      %v1174 = vld [vmem:[%s4 + $0x10] sm:$0x3]
      %v1175 = vld [vmem:[%s5] sm:$0x1]
      %v1177 = vperm.slane %v1175, 0
      %v1187 = vunpack.c.l.b16 %v1162
      %v1188 = vunpack.c.l.b16 %v1163
      %v1189 = vunpack.c.l.b16 %v1164
      %v1190 = vunpack.c.l.b16 %v1165
      %v1191 = vunpack.c.l.b16 %v1166
      %v1192 = vunpack.c.l.b16 %v1167
      %v1193 = vunpack.c.l.b16 %v1168
      %v1194 = vunpack.c.l.b16 %v1169
      %v1195 = vpack.c.b16 %v1188, %v1187
      %v1196 = vpack.c.b16 %v1190, %v1189
      %v1197 = vpack.c.b16 %v1192, %v1191
      %v1198 = vpack.c.b16 %v1194, %v1193
      %v1204 = vunpack.c.l.b16 %v1170
      %v1205 = vunpack.c.l.b16 %v1171
      %v1206 = vunpack.c.l.b16 %v1172
      %v1207 = vunpack.c.l.b16 %v1173
      %v1208 = vunpack.c.l.b16 %v1174
      %v1209 = vpack.c.b16 %v1205, %v1204
      %v1210 = vpack.c.b16 %v1207, %v1206
      %v1211 = vpack.c.b16 %v1208, %v1208
      %vm1214 = vcmask 293888
      %v1216 = vsel %vm1214, %v1195, 0
      %v1219 = vsel %vm1214, %v1196, 0
      %v1222 = vsel %vm1214, %v1197, 0
      %v1225 = vsel %vm1214, %v1198, 0
      %vm1227 = vcmask 1041408
      %v1229 = vsel %vm1227, %v1211, 0
      %1231 = vmatpush.bf16.msra.mxu0 0
      %1232 = vmatpush.bf16.msra.mxu0 0
      %1233 = vmatpush.bf16.msra.mxu0 0
      %1234 = vmatpush.bf16.msra.mxu0 0
      %1235 = vmatpush.bf16.msra.mxu0 0
      %1236 = vmatpush.bf16.msra.mxu0 %v1229
      %1237 = vmatpush.bf16.msra.mxu0 %v1210
      %1238 = vmatpush.bf16.msra.mxu0 %v1209
      %1239 = vmatmul.bf16.gmra.mxu0 %v1216
      %v1240 = vpop.f32.mrf.mxu0
      %v1241 = vadd.f32 %v1177, %v1240
      %v1242 = vpop.f32.mrf.mxu0
      %v1243 = vadd.f32 %v1177, %v1242
      %1244 = vmatmul.bf16.gmra.mxu0 %v1219
      %v1245 = vpop.f32.mrf.mxu0
      %v1246 = vadd.f32 %v1177, %v1245
      %v1247 = vpop.f32.mrf.mxu0
      %v1248 = vadd.f32 %v1177, %v1247
      %1249 = vmatmul.bf16.gmra.mxu0 %v1222
      %v1250 = vpop.f32.mrf.mxu0
      %v1251 = vadd.f32 %v1177, %v1250
      %v1252 = vpop.f32.mrf.mxu0
      %v1253 = vadd.f32 %v1177, %v1252
      %1254 = vmatmul.bf16.gmra.mxu0 %v1225
      %v1255 = vpop.f32.mrf.mxu0
      %v1256 = vadd.f32 %v1177, %v1255
      %v1257 = vpop.f32.mrf.mxu0
      %v1258 = vadd.f32 %v1177, %v1257
      %1259 = vdwg.mxu0
      %vm1260 = vcmask 31744
      %1261 = vst.msk [vmem:[%s409] sm:$0xff] %vm1260, %v1241
      %1262 = vst.msk [vmem:[%s409 + $0x8] sm:$0xff] %vm1260, %v1243
      %1263 = vst.msk [vmem:[%s409 + $0x10] sm:$0xff] %vm1260, %v1246
      %1264 = vst.msk [vmem:[%s409 + $0x18] sm:$0xff] %vm1260, %v1248
      %1265 = vst.msk [vmem:[%s409 + $0x20] sm:$0xff] %vm1260, %v1251
      %1266 = vst.msk [vmem:[%s409 + $0x28] sm:$0xff] %vm1260, %v1253
      %1267 = vst.msk [vmem:[%s409 + $0x30] sm:$0xff] %vm1260, %v1256
      %1268 = vst.msk [vmem:[%s409 + $0x38] sm:$0xff] %vm1260, %v1258
      %s1269 = smul.u32 8, %s22
      %p1270 = scmp.lt.s32.totalorder %s21, 1
      %s1271 = scalar_select %p1270, %s21, 1
      %p1272 = scmp.lt.s32.totalorder %s1269, 7
      %s1273 = scalar_select %p1272, %s1269, 7
      %s1274 = smul.addr %s1271, 8
      %s1275 = sadd.s32 %s1273, %s1274
      %s1276 = smul.addr %s1275, 8
      %s1277 = scalar_lea.vmem %s6, %s1276
      // Predicated region
      $region45: #{down_sample.1} parent=43 // pred_check
        %p1278 = pneg %p203
      $region46: #{down_sample.1} parent=43 // pred_check_branch
        %1280 = sbr.rel (%p1278) target = $region48
      $region47: #{down_sample.1} parent=43 // pred_region
        %s1281 = smul.u32 8, %s22
      $region48: #{down_sample.1} parent=43 // pred_fallthru
        _
    $region44: #{down_sample.1} parent=5 // pred_fallthru
      _
    %p1282 = scmp.le.s32.totalorder 2, %s12
    // Predicated region
    $region49: #{down_sample.1} parent=5 // pred_check
      %p1283 = pneg %p1282
    $region50: #{down_sample.1} parent=5 // pred_check_branch
      %1285 = sbr.rel (%p1283) target = $region52
    $region51: #{down_sample.1} parent=5 // pred_region
      %s1286 = ssub.s32 %s12, 2
      // Predicated region
      $region53: #{down_sample.1} parent=51 // pred_check
        %p1287 = pneg %p209
      $region54: #{down_sample.1} parent=51 // pred_check_branch
        %1289 = sbr.rel (%p1287) target = $region56
      $region55: #{down_sample.1} parent=51 // pred_region
        %s1290 = smul.u32 8, %s24
        %p1291 = scmp.lt.s32.totalorder %s23, 1
        %s1292 = scalar_select %p1291, %s23, 1
        %p1293 = scmp.lt.s32.totalorder %s1290, 7
        %s1294 = scalar_select %p1293, %s1290, 7
        %s1295 = smul.addr %s1292, 8
        %s1296 = sadd.s32 %s1294, %s1295
        %s1297 = smul.addr %s1296, 8
        %s1298 = scalar_lea.vmem %s6, %s1297
      $region56: #{down_sample.1} parent=51 // pred_fallthru
        _
    $region52: #{down_sample.1} parent=5 // pred_fallthru
      _
  $region6: #{down_sample.1} parent=0 // loop_footer
    %s16 = sadd.s32 1, %s12
  $region7: #{down_sample.1} parent=0 // loop_footer_branch
    %11 = sbr.rel target = $region3
  $region8: #{down_sample.1} parent=0 // loop_exit
    _

</llo_original>
